<compile_context>
chip_gen: v7x
topology: tpu7x:2x2x1
jax: 0.10.0
libtpu: 0.0.40
codegen_flags: <defaults>
</compile_context>

<pallas_src>
import jax
import jax.numpy as jnp
from jax.experimental import pallas as pl
from jax.experimental.pallas import tpu as pltpu


def _sigmoid(x):
    # One EUP transcendental per gate instead of exp + divide.
    return 0.5 * (jnp.tanh(0.5 * x) + 1.0)


# ---------------------------------------------------------------------------
# Offline parameter packing (do once, reuse every step)
# ---------------------------------------------------------------------------
def prepare_params(params, compute_dtype=jnp.bfloat16):
    """Pack LSTMCellv2 parameters into a gate-major, kernel-friendly layout.

    params: dict with
      w_xh (input_size, 4H), b_xh (4H,), w_hh (H, 4H), b_hh (4H,)
      (weights pre-transposed relative to nn.Linear.weight so kernels do x @ w)

    Returns packed wx (4, I, H), wh (4, H, H) in compute_dtype and a fused f32
    bias (4, 1, H).  Gate order matches torch .chunk(4, 1): [i | f | g | o].
    """
    w_xh = jnp.asarray(params["w_xh"])
    w_hh = jnp.asarray(params["w_hh"])
    I, H4 = w_xh.shape
    H = H4 // 4
    wx = w_xh.reshape(I, 4, H).transpose(1, 0, 2).astype(compute_dtype)
    wh = w_hh.reshape(H, 4, H).transpose(1, 0, 2).astype(compute_dtype)
    b = (params["b_xh"] + params["b_hh"]).reshape(4, 1, H).astype(jnp.float32)
    return {"wx": wx, "wh": wh, "b": b, "I": int(I), "H": int(H),
            "compute_dtype": compute_dtype}


def _pick_hidden_tile(H, max_tile_h):
    """Lane-multiple gate-column tile; full-extent block if H is unaligned."""
    if H % 128 != 0:
        return H                      # full-extent block is always layout-legal
    for cand in (1024, 512, 256, 128):
        if cand <= max_tile_h and H % cand == 0:
            return cand
    return 128


# ---------------------------------------------------------------------------
# Single-step kernel (grid over gate columns)
# ---------------------------------------------------------------------------
def _lstm_step_kernel(x_ref, hx_ref, cx_ref, wx_ref, wh_ref, b_ref,
                      hy_ref, cy_ref):
    """One gate-column tile of a single LSTM step.

    Block shapes (TH = hidden tile):
      x (B,I), hx (B,H)   : constant index_map -> VMEM-resident across tiles
      cx (B,TH)           : tiled
      wx (4,I,TH), wh (4,H,TH), b (4,1,TH) : tiled, gate-major
      hy/cy (B,TH)        : tiled outputs
    """
    x = x_ref[...].astype(wx_ref.dtype)
    h = hx_ref[...].astype(wh_ref.dtype)

    def gate(g):
        return (jnp.dot(x, wx_ref[g], preferred_element_type=jnp.float32)
                + jnp.dot(h, wh_ref[g], preferred_element_type=jnp.float32)
                + b_ref[g])

    i_t = _sigmoid(gate(0))
    f_t = _sigmoid(gate(1))
    g_t = jnp.tanh(gate(2))
    o_t = _sigmoid(gate(3))

    cx = cx_ref[...].astype(jnp.float32)
    cy = cx * f_t + i_t * g_t
    hy = o_t * jnp.tanh(cy)

    hy_ref[...] = hy.astype(hy_ref.dtype)
    cy_ref[...] = cy.astype(cy_ref.dtype)


def lstm_cell_v2(x, prepped, hidden=None, *, max_tile_h=512):
    """Pallas implementation of LSTMCellv2.forward (single step).

    x: (B, input_size); hidden: optional (hx, cx) each (B, H).
    Returns (hy, (hy, cy)); hy in x.dtype, cy kept f32 (cell state should not
    be truncated between steps).
    """
    B, I = x.shape
    H = prepped["H"]
    assert I == prepped["I"]
    if hidden is None:
        z = jnp.zeros((B, H), dtype=x.dtype)
        hidden = (z, z)
    hx, cx = hidden
    wx, wh, b = prepped["wx"], prepped["wh"], prepped["b"]
    wbytes = jnp.dtype(prepped["compute_dtype"]).itemsize

    TH = _pick_hidden_tile(H, max_tile_h)
    nh = H // TH

    # Scoped-VMEM budget: resident x/hx + double-buffered tiles + headroom.
    tile_bytes = (4 * (I + H) * TH * wbytes   # weight tiles
                  + 4 * TH * 4                # bias tile
                  + 3 * B * TH * 4)           # cx / hy / cy tiles (f32 bound)
    resident_bytes = B * (I + H) * x.dtype.itemsize
    needed = resident_bytes + 2 * tile_bytes + (4 << 20)
    # Cap at 64 MiB so the same choice is legal on v7x (64 MiB physical VMEM).
    vmem_limit = int(min(64 << 20, max(32 << 20, needed)))

    cost = pl.CostEstimate(
        flops=2 * B * (I + H) * 4 * H,
        transcendentals=5 * B * H,
        bytes_accessed=(4 * (I + H) * H * wbytes + 4 * H * 4
                        + B * (I + H) * x.dtype.itemsize
                        + B * H * 4
                        + B * H * (x.dtype.itemsize + 4)),
    )

    hy, cy = pl.pallas_call(
        _lstm_step_kernel,
        grid=(nh,),
        in_specs=[
            pl.BlockSpec((B, I), lambda j: (0, 0)),
            pl.BlockSpec((B, H), lambda j: (0, 0)),
            pl.BlockSpec((B, TH), lambda j: (0, j)),
            pl.BlockSpec((4, I, TH), lambda j: (0, 0, j)),
            pl.BlockSpec((4, H, TH), lambda j: (0, 0, j)),
            pl.BlockSpec((4, 1, TH), lambda j: (0, 0, j)),
        ],
        out_specs=(
            pl.BlockSpec((B, TH), lambda j: (0, j)),
            pl.BlockSpec((B, TH), lambda j: (0, j)),
        ),
        out_shape=(
            jax.ShapeDtypeStruct((B, H), x.dtype),
            jax.ShapeDtypeStruct((B, H), jnp.float32),
        ),
        compiler_params=pltpu.CompilerParams(
            # Gate-column tiles are independent: "parallel" lets v7x's two
            # TensorCores split the columns (no effect on v5e/v6e).
            dimension_semantics=("parallel",),
            vmem_limit_bytes=vmem_limit,
        ),
        cost_estimate=cost,
    )(x, hx, cx, wx, wh, b)
    return hy, (hy, cy)


# ---------------------------------------------------------------------------
# Weight-resident time-grid variant (T steps in one pallas_call)
# ---------------------------------------------------------------------------
def _lstm_seq_kernel(xs_ref, h0_ref, c0_ref, wx_ref, wh_ref, b_ref,
                     hs_ref, hT_ref, cT_ref, h_scr, c_scr):
    @pl.when(pl.program_id(0) == 0)
    def _():
        h_scr[...] = h0_ref[...].astype(jnp.float32)
        c_scr[...] = c0_ref[...].astype(jnp.float32)

    x = xs_ref[0].astype(wx_ref.dtype)
    h = h_scr[...].astype(wh_ref.dtype)

    def gate(g):
        return (jnp.dot(x, wx_ref[g], preferred_element_type=jnp.float32)
                + jnp.dot(h, wh_ref[g], preferred_element_type=jnp.float32)
                + b_ref[g])

    i_t = _sigmoid(gate(0))
    f_t = _sigmoid(gate(1))
    g_t = jnp.tanh(gate(2))
    o_t = _sigmoid(gate(3))

    cy = c_scr[...] * f_t + i_t * g_t
    hy = o_t * jnp.tanh(cy)

    h_scr[...] = hy          # carried in VMEM, never leaves the chip per step
    c_scr[...] = cy          # cell state carried in f32 across steps

    hs_ref[0] = hy.astype(hs_ref.dtype)
    hT_ref[...] = hy.astype(hT_ref.dtype)   # constant block -> written once
    cT_ref[...] = cy.astype(cT_ref.dtype)


def lstm_v2_sequence(xs, prepped, hidden=None):
    """T LSTMCellv2 steps in one pallas_call with VMEM-resident weights.

    xs: (T, B, input_size).  Returns (hs, (h_T, c_T)); hs is (T, B, H).
    """
    T, B, I = xs.shape
    H = prepped["H"]
    assert I == prepped["I"]
    if hidden is None:
        z = jnp.zeros((B, H), dtype=xs.dtype)
        hidden = (z, z)
    h0, c0 = hidden
    wx, wh, b = prepped["wx"], prepped["wh"], prepped["b"]
    wbytes = jnp.dtype(prepped["compute_dtype"]).itemsize

    weight_bytes = 4 * (I + H) * H * wbytes + 4 * H * 4
    act_bytes = (2 * B * I * xs.dtype.itemsize      # xs tile, double-buffered
                 + 2 * B * H * xs.dtype.itemsize    # hs tile, double-buffered
                 + 6 * B * H * 4)                   # h0/c0, hT/cT, h/c scratch
    needed = weight_bytes + act_bytes + (4 << 20)
    # TODO(synk): if the resident packed weight exceeds ~48 MiB (v7x physical
    # VMEM is 64 MiB), fall back to the tiled single-step kernel per time step.
    vmem_limit = int(min(64 << 20, max(32 << 20, needed)))

    cost = pl.CostEstimate(
        flops=2 * T * B * (I + H) * 4 * H,
        transcendentals=5 * T * B * H,
        bytes_accessed=(weight_bytes
                        + T * B * I * xs.dtype.itemsize
                        + T * B * H * xs.dtype.itemsize
                        + 4 * B * H * 4),
    )

    hs, hT, cT = pl.pallas_call(
        _lstm_seq_kernel,
        grid=(T,),
        in_specs=[
            pl.BlockSpec((1, B, I), lambda t: (t, 0, 0)),   # per-step x slab
            pl.BlockSpec((B, H), lambda t: (0, 0)),          # h0 (resident)
            pl.BlockSpec((B, H), lambda t: (0, 0)),          # c0 (resident)
            pl.BlockSpec((4, I, H), lambda t: (0, 0, 0)),    # wx DMA'd once
            pl.BlockSpec((4, H, H), lambda t: (0, 0, 0)),    # wh DMA'd once
            pl.BlockSpec((4, 1, H), lambda t: (0, 0, 0)),    # bias DMA'd once
        ],
        out_specs=(
            pl.BlockSpec((1, B, H), lambda t: (t, 0, 0)),    # hs per step
            pl.BlockSpec((B, H), lambda t: (0, 0)),           # final h
            pl.BlockSpec((B, H), lambda t: (0, 0)),           # final c (f32)
        ),
        out_shape=(
            jax.ShapeDtypeStruct((T, B, H), xs.dtype),
            jax.ShapeDtypeStruct((B, H), xs.dtype),
            jax.ShapeDtypeStruct((B, H), jnp.float32),
        ),
        scratch_shapes=[
            pltpu.VMEM((B, H), jnp.float32),   # h carry
            pltpu.VMEM((B, H), jnp.float32),   # c carry (f32 across steps)
        ],
        compiler_params=pltpu.CompilerParams(
            dimension_semantics=("arbitrary",),   # sequential time recurrence
            vmem_limit_bytes=vmem_limit,
        ),
        cost_estimate=cost,
    )(xs, h0, c0, wx, wh, b)
    return hs, (hT, cT)


# ---------------------------------------------------------------------------
# Init + pure-JAX reference (mirrors the PyTorch forward)
# ---------------------------------------------------------------------------
def init_params(key, input_size, hidden_size):
    """uniform(-std, std), std = 1/sqrt(H), matching reset_parameters."""
    std = 1.0 / jnp.sqrt(jnp.float32(hidden_size))
    k1, k2, k3, k4 = jax.random.split(key, 4)
    w_xh = jax.random.uniform(k1, (input_size, 4 * hidden_size), jnp.float32, -std, std)
    b_xh = jax.random.uniform(k2, (4 * hidden_size,), jnp.float32, -std, std)
    w_hh = jax.random.uniform(k3, (hidden_size, 4 * hidden_size), jnp.float32, -std, std)
    b_hh = jax.random.uniform(k4, (4 * hidden_size,), jnp.float32, -std, std)
    return {"w_xh": w_xh, "b_xh": b_xh, "w_hh": w_hh, "b_hh": b_hh}


def reference(x, params, hidden=None):
    B = x.shape[0]
    H = params["w_hh"].shape[0]
    if hidden is None:
        z = jnp.zeros((B, H), dtype=x.dtype)
        hidden = (z, z)
    hx, cx = hidden
    gates = x @ params["w_xh"] + params["b_xh"] + hx @ params["w_hh"] + params["b_hh"]
    i, f, g, o = jnp.split(gates, 4, axis=1)
    i_t = jax.nn.sigmoid(i)
    f_t = jax.nn.sigmoid(f)
    g_t = jnp.tanh(g)
    o_t = jax.nn.sigmoid(o)
    cy = cx * f_t + i_t * g_t
    hy = o_t * jnp.tanh(cy)
    return hy, (hy, cy)


if __name__ == "__main__":
    key = jax.random.PRNGKey(0)
    (k_param, k_x, k_h, k_c, k_seq,
     k_p2, k_x2, k_h2, k_c2) = jax.random.split(key, 9)

    batch, input_size, hidden_size, seq_len = 8, 16, 32, 6

    params = init_params(k_param, input_size, hidden_size)
    x = jax.random.normal(k_x, (batch, input_size), jnp.float32)
    hx = jax.random.normal(k_h, (batch, hidden_size), jnp.float32)
    cx = jax.random.normal(k_c, (batch, hidden_size), jnp.float32)

    prepped_f32 = prepare_params(params, jnp.float32)
    prepped_bf16 = prepare_params(params, jnp.bfloat16)

    # --- single step: f32 (tight), default hidden, bf16 weights (loose) ---
    hy_f32, (_, cy_f32) = lstm_cell_v2(x, prepped_f32, (hx, cx))
    hy0_f32, (_, cy0_f32) = lstm_cell_v2(x, prepped_f32, None)
    hy_bf16, (_, cy_bf16) = lstm_cell_v2(x, prepped_bf16, (hx, cx))

    ref_hy, (_, ref_cy) = reference(x, params, (hx, cx))
    ref_hy0, (_, ref_cy0) = reference(x, params, None)

    assert jnp.allclose(hy_f32, ref_hy, atol=1e-4, rtol=1e-4)
    assert jnp.allclose(cy_f32, ref_cy, atol=1e-4, rtol=1e-4)
    assert jnp.allclose(hy0_f32, ref_hy0, atol=1e-4, rtol=1e-4)
    assert jnp.allclose(cy0_f32, ref_cy0, atol=1e-4, rtol=1e-4)
    assert jnp.allclose(hy_bf16, ref_hy, atol=5e-2, rtol=5e-2)
    assert jnp.allclose(cy_bf16, ref_cy, atol=5e-2, rtol=5e-2)

    # --- tiled gate-column grid (H multiple of 128 -> grid of 2, "parallel") ---
    in2, hid2 = 64, 256
    params2 = init_params(k_p2, in2, hid2)
    x2 = jax.random.normal(k_x2, (batch, in2), jnp.float32)
    hx2 = jax.random.normal(k_h2, (batch, hid2), jnp.float32)
    cx2 = jax.random.normal(k_c2, (batch, hid2), jnp.float32)
    prepped2 = prepare_params(params2, jnp.float32)
    hy2, (_, cy2) = lstm_cell_v2(x2, prepped2, (hx2, cx2), max_tile_h=128)
    ref_hy2, (_, ref_cy2) = reference(x2, params2, (hx2, cx2))
    assert jnp.allclose(hy2, ref_hy2, atol=1e-4, rtol=1e-4)
    assert jnp.allclose(cy2, ref_cy2, atol=1e-4, rtol=1e-4)

    # --- weight-resident time grid (f32 tight, bf16 loose) ---
    xs = jax.random.normal(k_seq, (seq_len, batch, input_size), jnp.float32)
    hs, (hT, cT) = lstm_v2_sequence(xs, prepped_f32, (hx, cx))
    hs_b, (hT_b, cT_b) = lstm_v2_sequence(xs, prepped_bf16, (hx, cx))

    h_r, c_r = hx, cx
    hs_ref = []
    for t in range(seq_len):
        h_r, (_, c_r) = reference(xs[t], params, (h_r, c_r))
        hs_ref.append(h_r)
    hs_ref = jnp.stack(hs_ref, 0)

    jax.block_until_ready((hy_f32, cy_f32, hy0_f32, cy0_f32, hy_bf16, cy_bf16,
                           hy2, cy2, hs, hT, cT, hs_b, hT_b, cT_b))

    assert jnp.allclose(hs, hs_ref, atol=1e-4, rtol=1e-4)
    assert jnp.allclose(hT, hs_ref[-1], atol=1e-4, rtol=1e-4)
    assert jnp.allclose(cT, c_r, atol=1e-4, rtol=1e-4)
    assert jnp.allclose(hs_b, hs_ref, atol=1e-1, rtol=1e-1)

    print("KERNEL_OK")
</pallas_src>

<mosaic_0001>
module attributes {stable_mosaic.version = 11 : i64} {
  func.func @_lstm_step_kernel(%arg0: i32, %arg1: memref<8x16xf32, #tpu.memory_space<vmem>>, %arg2: memref<8x32xf32, #tpu.memory_space<vmem>>, %arg3: memref<8x32xf32, #tpu.memory_space<vmem>>, %arg4: memref<4x16x32xf32, #tpu.memory_space<vmem>>, %arg5: memref<4x32x32xf32, #tpu.memory_space<vmem>>, %arg6: memref<4x1x32xf32, #tpu.memory_space<vmem>>, %arg7: memref<8x32xf32, #tpu.memory_space<vmem>>, %arg8: memref<8x32xf32, #tpu.memory_space<vmem>>) attributes {dimension_semantics = [#tpu.dimension_semantics<parallel>], iteration_bounds = array<i64: 1>, scalar_prefetch = 0 : i64, scratch_operands = 0 : i64, tpu.core_type = #tpu.core_type<tc>, window_params = [{pipeline_mode = #tpu.pipeline_mode<synchronous>, transform_indices = @transform_0, window_bounds = array<i64: 8, 16>}, {pipeline_mode = #tpu.pipeline_mode<synchronous>, transform_indices = @transform_1, window_bounds = array<i64: 8, 32>}, {transform_indices = @transform_2, window_bounds = array<i64: 8, 32>}, {transform_indices = @transform_3, window_bounds = array<i64: 4, 16, 32>}, {transform_indices = @transform_4, window_bounds = array<i64: 4, 32, 32>}, {transform_indices = @transform_5, window_bounds = array<i64: 4, 1, 32>}, {transform_indices = @transform_6, window_bounds = array<i64: 8, 32>}, {transform_indices = @transform_7, window_bounds = array<i64: 8, 32>}]} {
    %c0 = arith.constant 0 : index
    %c0_0 = arith.constant 0 : index
    %0 = vector.load %arg1[%c0, %c0_0] : memref<8x16xf32, #tpu.memory_space<vmem>>, vector<8x16xf32>
    %c0_1 = arith.constant 0 : index
    %c0_2 = arith.constant 0 : index
    %1 = vector.load %arg2[%c0_1, %c0_2] : memref<8x32xf32, #tpu.memory_space<vmem>>, vector<8x32xf32>
    %c0_3 = arith.constant 0 : index
    %c0_4 = arith.constant 0 : index
    %c0_5 = arith.constant 0 : index
    %2 = vector.load %arg4[%c0_3, %c0_4, %c0_5] : memref<4x16x32xf32, #tpu.memory_space<vmem>>, vector<1x16x32xf32>
    %3 = vector.shape_cast %2 : vector<1x16x32xf32> to vector<16x32xf32>
    %cst = arith.constant dense<0.000000e+00> : vector<8x32xf32>
    %4 = tpu.matmul %0, %3, %cst {dimension_numbers = #tpu.dot_dimension_numbers<[1], [0], [0], [1], [0, 0, 1, 1], [], []>} : vector<8x16xf32>, vector<16x32xf32>, vector<8x32xf32> -> vector<8x32xf32>
    %c0_6 = arith.constant 0 : index
    %c0_7 = arith.constant 0 : index
    %c0_8 = arith.constant 0 : index
    %5 = vector.load %arg5[%c0_6, %c0_7, %c0_8] : memref<4x32x32xf32, #tpu.memory_space<vmem>>, vector<1x32x32xf32>
    %6 = vector.shape_cast %5 : vector<1x32x32xf32> to vector<32x32xf32>
    %cst_9 = arith.constant dense<0.000000e+00> : vector<8x32xf32>
    %7 = tpu.matmul %1, %6, %cst_9 {dimension_numbers = #tpu.dot_dimension_numbers<[1], [0], [0], [1], [0, 0, 1, 1], [], []>} : vector<8x32xf32>, vector<32x32xf32>, vector<8x32xf32> -> vector<8x32xf32>
    %8 = arith.addf %4, %7 : vector<8x32xf32>
    %c0_10 = arith.constant 0 : index
    %c0_11 = arith.constant 0 : index
    %c0_12 = arith.constant 0 : index
    %9 = vector.load %arg6[%c0_10, %c0_11, %c0_12] : memref<4x1x32xf32, #tpu.memory_space<vmem>>, vector<1x1x32xf32>
    %10 = vector.shape_cast %9 : vector<1x1x32xf32> to vector<1x32xf32>
    %11 = vector.broadcast %10 : vector<1x32xf32> to vector<8x32xf32>
    %12 = arith.addf %8, %11 : vector<8x32xf32>
    %cst_13 = arith.constant 5.000000e-01 : f32
    %13 = vector.broadcast %cst_13 : f32 to vector<8x32xf32>
    %14 = arith.mulf %13, %12 : vector<8x32xf32>
    %15 = math.tanh %14 : vector<8x32xf32>
    %cst_14 = arith.constant 1.000000e+00 : f32
    %16 = vector.broadcast %cst_14 : f32 to vector<8x32xf32>
    %17 = arith.addf %15, %16 : vector<8x32xf32>
    %cst_15 = arith.constant 5.000000e-01 : f32
    %18 = vector.broadcast %cst_15 : f32 to vector<8x32xf32>
    %19 = arith.mulf %18, %17 : vector<8x32xf32>
    %c1 = arith.constant 1 : index
    %c0_16 = arith.constant 0 : index
    %c0_17 = arith.constant 0 : index
    %20 = vector.load %arg4[%c1, %c0_16, %c0_17] : memref<4x16x32xf32, #tpu.memory_space<vmem>>, vector<1x16x32xf32>
    %21 = vector.shape_cast %20 : vector<1x16x32xf32> to vector<16x32xf32>
    %cst_18 = arith.constant dense<0.000000e+00> : vector<8x32xf32>
    %22 = tpu.matmul %0, %21, %cst_18 {dimension_numbers = #tpu.dot_dimension_numbers<[1], [0], [0], [1], [0, 0, 1, 1], [], []>} : vector<8x16xf32>, vector<16x32xf32>, vector<8x32xf32> -> vector<8x32xf32>
    %c1_19 = arith.constant 1 : index
    %c0_20 = arith.constant 0 : index
    %c0_21 = arith.constant 0 : index
    %23 = vector.load %arg5[%c1_19, %c0_20, %c0_21] : memref<4x32x32xf32, #tpu.memory_space<vmem>>, vector<1x32x32xf32>
    %24 = vector.shape_cast %23 : vector<1x32x32xf32> to vector<32x32xf32>
    %cst_22 = arith.constant dense<0.000000e+00> : vector<8x32xf32>
    %25 = tpu.matmul %1, %24, %cst_22 {dimension_numbers = #tpu.dot_dimension_numbers<[1], [0], [0], [1], [0, 0, 1, 1], [], []>} : vector<8x32xf32>, vector<32x32xf32>, vector<8x32xf32> -> vector<8x32xf32>
    %26 = arith.addf %22, %25 : vector<8x32xf32>
    %c1_23 = arith.constant 1 : index
    %c0_24 = arith.constant 0 : index
    %c0_25 = arith.constant 0 : index
    %27 = vector.load %arg6[%c1_23, %c0_24, %c0_25] : memref<4x1x32xf32, #tpu.memory_space<vmem>>, vector<1x1x32xf32>
    %28 = vector.shape_cast %27 : vector<1x1x32xf32> to vector<1x32xf32>
    %29 = vector.broadcast %28 : vector<1x32xf32> to vector<8x32xf32>
    %30 = arith.addf %26, %29 : vector<8x32xf32>
    %cst_26 = arith.constant 5.000000e-01 : f32
    %31 = vector.broadcast %cst_26 : f32 to vector<8x32xf32>
    %32 = arith.mulf %31, %30 : vector<8x32xf32>
    %33 = math.tanh %32 : vector<8x32xf32>
    %cst_27 = arith.constant 1.000000e+00 : f32
    %34 = vector.broadcast %cst_27 : f32 to vector<8x32xf32>
    %35 = arith.addf %33, %34 : vector<8x32xf32>
    %cst_28 = arith.constant 5.000000e-01 : f32
    %36 = vector.broadcast %cst_28 : f32 to vector<8x32xf32>
    %37 = arith.mulf %36, %35 : vector<8x32xf32>
    %c2 = arith.constant 2 : index
    %c0_29 = arith.constant 0 : index
    %c0_30 = arith.constant 0 : index
    %38 = vector.load %arg4[%c2, %c0_29, %c0_30] : memref<4x16x32xf32, #tpu.memory_space<vmem>>, vector<1x16x32xf32>
    %39 = vector.shape_cast %38 : vector<1x16x32xf32> to vector<16x32xf32>
    %cst_31 = arith.constant dense<0.000000e+00> : vector<8x32xf32>
    %40 = tpu.matmul %0, %39, %cst_31 {dimension_numbers = #tpu.dot_dimension_numbers<[1], [0], [0], [1], [0, 0, 1, 1], [], []>} : vector<8x16xf32>, vector<16x32xf32>, vector<8x32xf32> -> vector<8x32xf32>
    %c2_32 = arith.constant 2 : index
    %c0_33 = arith.constant 0 : index
    %c0_34 = arith.constant 0 : index
    %41 = vector.load %arg5[%c2_32, %c0_33, %c0_34] : memref<4x32x32xf32, #tpu.memory_space<vmem>>, vector<1x32x32xf32>
    %42 = vector.shape_cast %41 : vector<1x32x32xf32> to vector<32x32xf32>
    %cst_35 = arith.constant dense<0.000000e+00> : vector<8x32xf32>
    %43 = tpu.matmul %1, %42, %cst_35 {dimension_numbers = #tpu.dot_dimension_numbers<[1], [0], [0], [1], [0, 0, 1, 1], [], []>} : vector<8x32xf32>, vector<32x32xf32>, vector<8x32xf32> -> vector<8x32xf32>
    %44 = arith.addf %40, %43 : vector<8x32xf32>
    %c2_36 = arith.constant 2 : index
    %c0_37 = arith.constant 0 : index
    %c0_38 = arith.constant 0 : index
    %45 = vector.load %arg6[%c2_36, %c0_37, %c0_38] : memref<4x1x32xf32, #tpu.memory_space<vmem>>, vector<1x1x32xf32>
    %46 = vector.shape_cast %45 : vector<1x1x32xf32> to vector<1x32xf32>
    %47 = vector.broadcast %46 : vector<1x32xf32> to vector<8x32xf32>
    %48 = arith.addf %44, %47 : vector<8x32xf32>
    %49 = math.tanh %48 : vector<8x32xf32>
    %c3 = arith.constant 3 : index
    %c0_39 = arith.constant 0 : index
    %c0_40 = arith.constant 0 : index
    %50 = vector.load %arg4[%c3, %c0_39, %c0_40] : memref<4x16x32xf32, #tpu.memory_space<vmem>>, vector<1x16x32xf32>
    %51 = vector.shape_cast %50 : vector<1x16x32xf32> to vector<16x32xf32>
    %cst_41 = arith.constant dense<0.000000e+00> : vector<8x32xf32>
    %52 = tpu.matmul %0, %51, %cst_41 {dimension_numbers = #tpu.dot_dimension_numbers<[1], [0], [0], [1], [0, 0, 1, 1], [], []>} : vector<8x16xf32>, vector<16x32xf32>, vector<8x32xf32> -> vector<8x32xf32>
    %c3_42 = arith.constant 3 : index
    %c0_43 = arith.constant 0 : index
    %c0_44 = arith.constant 0 : index
    %53 = vector.load %arg5[%c3_42, %c0_43, %c0_44] : memref<4x32x32xf32, #tpu.memory_space<vmem>>, vector<1x32x32xf32>
    %54 = vector.shape_cast %53 : vector<1x32x32xf32> to vector<32x32xf32>
    %cst_45 = arith.constant dense<0.000000e+00> : vector<8x32xf32>
    %55 = tpu.matmul %1, %54, %cst_45 {dimension_numbers = #tpu.dot_dimension_numbers<[1], [0], [0], [1], [0, 0, 1, 1], [], []>} : vector<8x32xf32>, vector<32x32xf32>, vector<8x32xf32> -> vector<8x32xf32>
    %56 = arith.addf %52, %55 : vector<8x32xf32>
    %c3_46 = arith.constant 3 : index
    %c0_47 = arith.constant 0 : index
    %c0_48 = arith.constant 0 : index
    %57 = vector.load %arg6[%c3_46, %c0_47, %c0_48] : memref<4x1x32xf32, #tpu.memory_space<vmem>>, vector<1x1x32xf32>
    %58 = vector.shape_cast %57 : vector<1x1x32xf32> to vector<1x32xf32>
    %59 = vector.broadcast %58 : vector<1x32xf32> to vector<8x32xf32>
    %60 = arith.addf %56, %59 : vector<8x32xf32>
    %cst_49 = arith.constant 5.000000e-01 : f32
    %61 = vector.broadcast %cst_49 : f32 to vector<8x32xf32>
    %62 = arith.mulf %61, %60 : vector<8x32xf32>
    %63 = math.tanh %62 : vector<8x32xf32>
    %cst_50 = arith.constant 1.000000e+00 : f32
    %64 = vector.broadcast %cst_50 : f32 to vector<8x32xf32>
    %65 = arith.addf %63, %64 : vector<8x32xf32>
    %cst_51 = arith.constant 5.000000e-01 : f32
    %66 = vector.broadcast %cst_51 : f32 to vector<8x32xf32>
    %67 = arith.mulf %66, %65 : vector<8x32xf32>
    %c0_52 = arith.constant 0 : index
    %c0_53 = arith.constant 0 : index
    %68 = vector.load %arg3[%c0_52, %c0_53] : memref<8x32xf32, #tpu.memory_space<vmem>>, vector<8x32xf32>
    %69 = arith.mulf %68, %37 : vector<8x32xf32>
    %70 = arith.mulf %19, %49 : vector<8x32xf32>
    %71 = arith.addf %69, %70 : vector<8x32xf32>
    %72 = math.tanh %71 : vector<8x32xf32>
    %73 = arith.mulf %67, %72 : vector<8x32xf32>
    %c0_54 = arith.constant 0 : index
    %c0_55 = arith.constant 0 : index
    %74 = vector.load %arg7[%c0_54, %c0_55] : memref<8x32xf32, #tpu.memory_space<vmem>>, vector<8x32xf32>
    tpu.vector_store %arg7[%c0_54, %c0_55], %73 {strides = array<i32>} : memref<8x32xf32, #tpu.memory_space<vmem>>, vector<8x32xf32>,
    %c0_56 = arith.constant 0 : index
    %c0_57 = arith.constant 0 : index
    %75 = vector.load %arg8[%c0_56, %c0_57] : memref<8x32xf32, #tpu.memory_space<vmem>>, vector<8x32xf32>
    tpu.vector_store %arg8[%c0_56, %c0_57], %71 {strides = array<i32>} : memref<8x32xf32, #tpu.memory_space<vmem>>, vector<8x32xf32>,
    return
  }
  func.func @transform_0(%arg0: i32) -> (i32, i32) {
    %c0_i32 = arith.constant 0 : i32
    %c0_i32_0 = arith.constant 0 : i32
    %c0_i32_1 = arith.constant 0 : i32
    return %c0_i32, %c0_i32_0 : i32, i32
  }
  func.func @transform_1(%arg0: i32) -> (i32, i32) {
    %c0_i32 = arith.constant 0 : i32
    %c0_i32_0 = arith.constant 0 : i32
    %c0_i32_1 = arith.constant 0 : i32
    return %c0_i32, %c0_i32_0 : i32, i32
  }
  func.func @transform_2(%arg0: i32) -> (i32, i32) {
    %c0_i32 = arith.constant 0 : i32
    %c0_i32_0 = arith.constant 0 : i32
    return %c0_i32, %arg0 : i32, i32
  }
  func.func @transform_3(%arg0: i32) -> (i32, i32, i32) {
    %c0_i32 = arith.constant 0 : i32
    %c0_i32_0 = arith.constant 0 : i32
    %c0_i32_1 = arith.constant 0 : i32
    return %c0_i32, %c0_i32_0, %arg0 : i32, i32, i32
  }
  func.func @transform_4(%arg0: i32) -> (i32, i32, i32) {
    %c0_i32 = arith.constant 0 : i32
    %c0_i32_0 = arith.constant 0 : i32
    %c0_i32_1 = arith.constant 0 : i32
    return %c0_i32, %c0_i32_0, %arg0 : i32, i32, i32
  }
  func.func @transform_5(%arg0: i32) -> (i32, i32, i32) {
    %c0_i32 = arith.constant 0 : i32
    %c0_i32_0 = arith.constant 0 : i32
    %c0_i32_1 = arith.constant 0 : i32
    return %c0_i32, %c0_i32_0, %arg0 : i32, i32, i32
  }
  func.func @transform_6(%arg0: i32) -> (i32, i32) {
    %c0_i32 = arith.constant 0 : i32
    %c0_i32_0 = arith.constant 0 : i32
    return %c0_i32, %arg0 : i32, i32
  }
  func.func @transform_7(%arg0: i32) -> (i32, i32) {
    %c0_i32 = arith.constant 0 : i32
    %c0_i32_0 = arith.constant 0 : i32
    return %c0_i32, %arg0 : i32, i32
  }
}

</mosaic_0001>

<llo_original>
// kernel: tpu_custom_call.1
$region0: #{tpu_custom_call.1}
  #allocation0 [shape = 'u32[]', space=smem, size = 0x4, offset = 0x4, fixed_abs, tag = 'smem constant byte address 0x4 - core index']
  #allocation1 [shape = 'u32[144,128]{1,0:T(1,128)}', space=vmem, size = 0x12000, scoped, tag = 'internal scratch']
  %s0 = inlined_call_operand.hbm [shape: f32[8,16], index: 0, kind: input, shape index: {}]
  %s1 = inlined_call_operand.hbm [shape: f32[8,32], index: 1, kind: input, shape index: {}]
  %s2 = inlined_call_operand.hbm [shape: f32[8,32], index: 2, kind: input, shape index: {}]
  %s3 = inlined_call_operand.hbm [shape: f32[4,16,32], index: 3, kind: input, shape index: {}]
  %s4 = inlined_call_operand.hbm [shape: f32[4,32,32], index: 4, kind: input, shape index: {}]
  %s5 = inlined_call_operand.vmem [shape: f32[4,1,32], index: 5, kind: input, shape index: {}]
  %s6 = inlined_call_operand.hbm [shape: f32[8,32], index: 6, kind: output, shape index: {0}]
  %s7 = inlined_call_operand.hbm [shape: f32[8,32], index: 7, kind: output, shape index: {1}]
  %8 = xla_tuple %s6, %s7
  %s9 = sld [smem:[#allocation0]]
  $region62: #{tpu_custom_call.1} parent=0
    _
  %s11 = ssub.s32 1, %s9
  %s12 = scalar_select 0, %s11, %s9
  $region1: #{tpu_custom_call.1} parent=0
    #allocation2 [shape = 'u8[4096]{0}', space=vmem, size = 0x1000, scoped, tag = 'input window, operand 0, single buffered']
    #allocation3 [shape = 's32[1]{0}', space=sflag, size = 0x4, scoped, tag = 'scoped memory for tpu_custom_call.1']
    #allocation4 [shape = 's32[1]{0}', space=sflag, size = 0x4, scoped, tag = 'scoped memory for tpu_custom_call.1']
    #allocation5 [shape = 'u8[4096]{0}', space=vmem, size = 0x1000, scoped, tag = 'input window, operand 1, single buffered']
    #allocation6 [shape = 's32[1]{0}', space=sflag, size = 0x4, scoped, tag = 'scoped memory for tpu_custom_call.1']
    #allocation7 [shape = 'u8[4096]{0}', space=vmem, size = 0x1000, scoped, tag = 'input window, operand 2, single buffered']
    #allocation8 [shape = 'u8[32768]{0}', space=vmem, size = 0x8000, scoped, tag = 'input window, operand 3, single buffered']
    #allocation9 [shape = 's32[1]{0}', space=sflag, size = 0x4, scoped, tag = 'scoped memory for tpu_custom_call.1']
    #allocation10 [shape = 'u8[65536]{0}', space=vmem, size = 0x10000, scoped, tag = 'input window, operand 4, single buffered']
    #allocation11 [shape = 'u8[4096]{0}', space=vmem, size = 0x1000, scoped, tag = 'output window, operand 0, single buffered']
    #allocation12 [shape = 'u8[4096]{0}', space=vmem, size = 0x1000, scoped, tag = 'output window, operand 1, single buffered']
    #allocation13 [shape = 's32[1]{0}', space=sflag, size = 0x4, scoped, tag = 'scoped memory for tpu_custom_call.1']
    %13 = vsyncpa [#allocation3], 0
    %14 = vsyncpa [#allocation6], 0
    %15 = vsyncpa [#allocation9], 0
    %16 = vsyncpa [#allocation4], 0
    %17 = vsyncpa [#allocation13], 0
    // Predicated region
    $region2: #{tpu_custom_call.1} parent=1 // pred_check
      _
    $region3: #{tpu_custom_call.1} parent=1 // pred_check_branch
      %19 = sbr.rel (0) target = $region5
    $region4: #{tpu_custom_call.1} parent=1 // pred_region
      %s21 = ssub.s32 128, 128
      %22 = vsyncadd [#allocation3], %s21
      %s24 = sshll.u32 [#allocation2], 4
      %s25 = int_to_ptr.vmem [resolvable:$true] %s24
      %27 = dma.hbm_to_vmem [thread:$0]  %s0, 128, %s25, [#allocation3]
    $region5: #{tpu_custom_call.1} parent=1 // pred_fallthru
      _
    // Predicated region
    $region6: #{tpu_custom_call.1} parent=1 // pred_check
      _
    $region7: #{tpu_custom_call.1} parent=1 // pred_check_branch
      %29 = sbr.rel (0) target = $region9
    $region8: #{tpu_custom_call.1} parent=1 // pred_region
      %s31 = ssub.s32 128, 128
      %32 = vsyncadd [#allocation6], %s31
      %s34 = sshll.u32 [#allocation5], 4
      %s35 = int_to_ptr.vmem [resolvable:$true] %s34
      %37 = dma.hbm_to_vmem [thread:$0]  %s1, 128, %s35, [#allocation6]
    $region9: #{tpu_custom_call.1} parent=1 // pred_fallthru
      _
    // Predicated region
    $region10: #{tpu_custom_call.1} parent=1 // pred_check
      _
    $region11: #{tpu_custom_call.1} parent=1 // pred_check_branch
      %39 = sbr.rel (0) target = $region13
    $region12: #{tpu_custom_call.1} parent=1 // pred_region
      %s41 = ssub.s32 128, 128
      %42 = vsyncadd [#allocation6], %s41
      %s44 = sshll.u32 [#allocation7], 4
      %s45 = int_to_ptr.vmem [resolvable:$true] %s44
      %47 = dma.hbm_to_vmem [thread:$0]  %s2, 128, %s45, [#allocation6]
    $region13: #{tpu_custom_call.1} parent=1 // pred_fallthru
      _
    // Predicated region
    $region14: #{tpu_custom_call.1} parent=1 // pred_check
      _
    $region15: #{tpu_custom_call.1} parent=1 // pred_check_branch
      %49 = sbr.rel (0) target = $region17
    $region16: #{tpu_custom_call.1} parent=1 // pred_region
      %s51 = ssub.s32 1024, 1024
      %52 = vsyncadd [#allocation9], %s51
      %s53 = sshll.u32 [#allocation8], 4
      %s54 = int_to_ptr.vmem [resolvable:$true] %s53
      %59 = dma.hbm_to_vmem [thread:$0]  %s3, 1024, %s54, [#allocation9], 128, 128, 8
    $region17: #{tpu_custom_call.1} parent=1 // pred_fallthru
      _
    // Predicated region
    $region18: #{tpu_custom_call.1} parent=1 // pred_check
      _
    $region19: #{tpu_custom_call.1} parent=1 // pred_check_branch
      %61 = sbr.rel (0) target = $region21
    $region20: #{tpu_custom_call.1} parent=1 // pred_region
      %s63 = ssub.s32 2048, 2048
      %64 = vsyncadd [#allocation9], %s63
      %s65 = sshll.u32 [#allocation10], 4
      %s66 = int_to_ptr.vmem [resolvable:$true] %s65
      %71 = dma.hbm_to_vmem [thread:$0]  %s4, 2048, %s66, [#allocation9], 128, 128, 8
    $region21: #{tpu_custom_call.1} parent=1 // pred_fallthru
      _
    // Predicated region
    $region22: #{tpu_custom_call.1} parent=1 // pred_check
      _
    $region23: #{tpu_custom_call.1} parent=1 // pred_check_branch
      %73 = sbr.rel (0) target = $region25
    $region24: #{tpu_custom_call.1} parent=1 // pred_region
      _
    $region25: #{tpu_custom_call.1} parent=1 // pred_fallthru
      _
    // Predicated region
    $region26: #{tpu_custom_call.1} parent=1 // pred_check
      _
    $region27: #{tpu_custom_call.1} parent=1 // pred_check_branch
      %75 = sbr.rel (0) target = $region29
    $region28: #{tpu_custom_call.1} parent=1 // pred_region
      %76 = dma.done [#allocation3], 128
    $region29: #{tpu_custom_call.1} parent=1 // pred_fallthru
      _
    // Predicated region
    $region30: #{tpu_custom_call.1} parent=1 // pred_check
      _
    $region31: #{tpu_custom_call.1} parent=1 // pred_check_branch
      %78 = sbr.rel (0) target = $region33
    $region32: #{tpu_custom_call.1} parent=1 // pred_region
      %79 = dma.done [#allocation6], 128
    $region33: #{tpu_custom_call.1} parent=1 // pred_fallthru
      _
    // Predicated region
    $region34: #{tpu_custom_call.1} parent=1 // pred_check
      _
    $region35: #{tpu_custom_call.1} parent=1 // pred_check_branch
      %81 = sbr.rel (0) target = $region37
    $region36: #{tpu_custom_call.1} parent=1 // pred_region
      %82 = dma.done [#allocation6], 128
    $region37: #{tpu_custom_call.1} parent=1 // pred_fallthru
      _
    // Predicated region
    $region38: #{tpu_custom_call.1} parent=1 // pred_check
      _
    $region39: #{tpu_custom_call.1} parent=1 // pred_check_branch
      %84 = sbr.rel (0) target = $region41
    $region40: #{tpu_custom_call.1} parent=1 // pred_region
      %85 = dma.done [#allocation9], 1024
    $region41: #{tpu_custom_call.1} parent=1 // pred_fallthru
      _
    // Predicated region
    $region42: #{tpu_custom_call.1} parent=1 // pred_check
      _
    $region43: #{tpu_custom_call.1} parent=1 // pred_check_branch
      %87 = sbr.rel (0) target = $region45
    $region44: #{tpu_custom_call.1} parent=1 // pred_region
      %88 = dma.done [#allocation9], 2048
    $region45: #{tpu_custom_call.1} parent=1 // pred_fallthru
      _
    %v89 = vld [vmem:[#allocation2] sm:$0xff]
    %v90 = vld [vmem:[#allocation5] sm:$0xff]
    %v91 = vld [vmem:[#allocation8] sm:$0xff]
    %v92 = vld [vmem:[#allocation8 + $0x8] sm:$0xff]
    %v93 = vld [vmem:[#allocation10] sm:$0xff]
    %v94 = vld [vmem:[#allocation10 + $0x8] sm:$0xff]
    %v95 = vld [vmem:[#allocation10 + $0x10] sm:$0xff]
    %v96 = vld [vmem:[#allocation10 + $0x18] sm:$0xff]
    %vm97 = vcmask 261120
    %v99 = vsel %vm97, %v90, 0
    %101 = vmatprep.subr.mxu0 0.0
    %102 = vmatpush1.msra.mxu0 %v93
    %103 = vmatprep.subr.mxu0 0.0
    %104 = vmatpush1.msra.mxu0 %v94
    %105 = vmatprep.subr.mxu0 0.0
    %106 = vmatpush1.msra.mxu0 %v95
    %107 = vmatprep.subr.mxu0 0.0
    %108 = vmatpush1.msra.mxu0 %v96
    %109 = vmatprep.subr.mxu0 0.0
    %110 = vmatpush1.msra.mxu0 0.0
    %111 = vmatprep.subr.mxu0 0.0
    %112 = vmatpush1.msra.mxu0 0.0
    %113 = vmatprep.subr.mxu0 0.0
    %114 = vmatpush1.msra.mxu0 0.0
    %115 = vmatprep.subr.mxu0 0.0
    %116 = vmatpush1.msra.mxu0 0.0
    %117 = vmatprep.subr.mxu0 0.0
    %118 = vmatpush1.msra.mxu0 0.0
    %119 = vmatprep.subr.mxu0 0.0
    %120 = vmatpush1.msra.mxu0 0.0
    %121 = vmatprep.subr.mxu0 0.0
    %122 = vmatpush1.msra.mxu0 0.0
    %123 = vmatprep.subr.mxu0 0.0
    %124 = vmatpush1.msra.mxu0 0.0
    %125 = vmatprep.subr.mxu0 0.0
    %126 = vmatpush1.msra.mxu0 0.0
    %127 = vmatprep.subr.mxu0 0.0
    %128 = vmatpush1.msra.mxu0 0.0
    %129 = vmatprep.subr.mxu0 0.0
    %130 = vmatpush1.msra.mxu0 0.0
    %131 = vmatprep.subr.mxu0 0.0
    %132 = vmatpush1.msra.mxu0 0.0
    %133 = vmatprep.subr.mxu0 0.0
    %134 = vmatpush1.msra.mxu0 0.0
    %135 = vmatprep.subr.mxu0 0.0
    %136 = vmatpush1.msra.mxu0 0.0
    %137 = vmatprep.subr.mxu0 0.0
    %138 = vmatpush1.msra.mxu0 0.0
    %139 = vmatprep.subr.mxu0 0.0
    %140 = vmatpush1.msra.mxu0 0.0
    %141 = vmatprep.subr.mxu0 0.0
    %142 = vmatpush1.msra.mxu0 0.0
    %143 = vmatprep.subr.mxu0 0.0
    %144 = vmatpush1.msra.mxu0 0.0
    %145 = vmatprep.subr.mxu0 0.0
    %146 = vmatpush1.msra.mxu0 0.0
    %147 = vmatprep.subr.mxu0 0.0
    %148 = vmatpush1.msra.mxu0 0.0
    %149 = vmatprep.subr.mxu0 0.0
    %150 = vmatpush1.msra.mxu0 0.0
    %151 = vmatprep.subr.mxu0 0.0
    %152 = vmatpush1.msra.mxu0 0.0
    %153 = vmatprep.subr.mxu0 0.0
    %154 = vmatpush1.msra.mxu0 0.0
    %155 = vmatprep.subr.mxu0 0.0
    %156 = vmatpush1.msra.mxu0 0.0
    %157 = vmatprep.subr.mxu0 0.0
    %158 = vmatpush1.msra.mxu0 0.0
    %159 = vmatprep.subr.mxu0 0.0
    %160 = vmatpush1.msra.mxu0 0.0
    %161 = vmatprep.subr.mxu0 0.0
    %162 = vmatpush1.msra.mxu0 0.0
    %163 = vmatprep.subr.mxu0 0.0
    %164 = vmatpush1.msra.mxu0 0.0
    %165 = vmatprep.mubr.f32.mxu0 0.0
    %166 = vmatmul.mubr.f32.gmra.mrb[0].mxu0 %v99
    %v167 = vpop.f32.mrb[0].mxu0
    %v168 = vadd.f32 0.0, %v167
    %v169 = vpop.f32.mrb[0].mxu0
    %170 = vdwg.mxu0
    %vm171 = vcmask 130048
    %v173 = vsel %vm171, %v89, 0
    %175 = vmatprep.subr.mxu0 0.0
    %176 = vmatpush1.msra.mxu0 %v91
    %177 = vmatprep.subr.mxu0 0.0
    %178 = vmatpush1.msra.mxu0 %v92
    %179 = vmatprep.subr.mxu0 0.0
    %180 = vmatpush1.msra.mxu0 0.0
    %181 = vmatprep.subr.mxu0 0.0
    %182 = vmatpush1.msra.mxu0 0.0
    %183 = vmatprep.subr.mxu0 0.0
    %184 = vmatpush1.msra.mxu0 0.0
    %185 = vmatprep.subr.mxu0 0.0
    %186 = vmatpush1.msra.mxu0 0.0
    %187 = vmatprep.subr.mxu0 0.0
    %188 = vmatpush1.msra.mxu0 0.0
    %189 = vmatprep.subr.mxu0 0.0
    %190 = vmatpush1.msra.mxu0 0.0
    %191 = vmatprep.subr.mxu0 0.0
    %192 = vmatpush1.msra.mxu0 0.0
    %193 = vmatprep.subr.mxu0 0.0
    %194 = vmatpush1.msra.mxu0 0.0
    %195 = vmatprep.subr.mxu0 0.0
    %196 = vmatpush1.msra.mxu0 0.0
    %197 = vmatprep.subr.mxu0 0.0
    %198 = vmatpush1.msra.mxu0 0.0
    %199 = vmatprep.subr.mxu0 0.0
    %200 = vmatpush1.msra.mxu0 0.0
    %201 = vmatprep.subr.mxu0 0.0
    %202 = vmatpush1.msra.mxu0 0.0
    %203 = vmatprep.subr.mxu0 0.0
    %204 = vmatpush1.msra.mxu0 0.0
    %205 = vmatprep.subr.mxu0 0.0
    %206 = vmatpush1.msra.mxu0 0.0
    %207 = vmatprep.subr.mxu0 0.0
    %208 = vmatpush1.msra.mxu0 0.0
    %209 = vmatprep.subr.mxu0 0.0
    %210 = vmatpush1.msra.mxu0 0.0
    %211 = vmatprep.subr.mxu0 0.0
    %212 = vmatpush1.msra.mxu0 0.0
    %213 = vmatprep.subr.mxu0 0.0
    %214 = vmatpush1.msra.mxu0 0.0
    %215 = vmatprep.subr.mxu0 0.0
    %216 = vmatpush1.msra.mxu0 0.0
    %217 = vmatprep.subr.mxu0 0.0
    %218 = vmatpush1.msra.mxu0 0.0
    %219 = vmatprep.subr.mxu0 0.0
    %220 = vmatpush1.msra.mxu0 0.0
    %221 = vmatprep.subr.mxu0 0.0
    %222 = vmatpush1.msra.mxu0 0.0
    %223 = vmatprep.subr.mxu0 0.0
    %224 = vmatpush1.msra.mxu0 0.0
    %225 = vmatprep.subr.mxu0 0.0
    %226 = vmatpush1.msra.mxu0 0.0
    %227 = vmatprep.subr.mxu0 0.0
    %228 = vmatpush1.msra.mxu0 0.0
    %229 = vmatprep.subr.mxu0 0.0
    %230 = vmatpush1.msra.mxu0 0.0
    %231 = vmatprep.subr.mxu0 0.0
    %232 = vmatpush1.msra.mxu0 0.0
    %233 = vmatprep.subr.mxu0 0.0
    %234 = vmatpush1.msra.mxu0 0.0
    %235 = vmatprep.subr.mxu0 0.0
    %236 = vmatpush1.msra.mxu0 0.0
    %237 = vmatprep.subr.mxu0 0.0
    %238 = vmatpush1.msra.mxu0 0.0
    %239 = vmatprep.mubr.f32.mxu0 0.0
    %240 = vmatmul.mubr.f32.gmra.mrb[0].mxu0 %v173
    %v241 = vpop.f32.mrb[0].mxu0
    %v242 = vadd.f32 %v168, %v241
    %v243 = vpop.f32.mrb[0].mxu0
    %244 = vdwg.mxu0
    %v245 = vld [vmem:[%s5] sm:$0x1]
    %v247 = vlaneseq
    %v248 = vshrl.u32 %v247, 7
    %v249 = vsub.s32 0, %v248
    %v250 = vrot.slane %v245, %v249
    %v252 = vadd.f32 %v242, %v250
    %v253 = vmul.f32 %v252, 0.5
    %v254 = vtanh.pop %v253
    %v255 = vadd.f32 %v254, 1.0
    %v256 = vmul.f32 %v255, 0.5
    %s257 = scalar_lea.vmem [#allocation8], 16
    %v258 = vld [vmem:[%s257] sm:$0xff]
    %v259 = vld [vmem:[%s257 + $0x8] sm:$0xff]
    %s260 = scalar_lea.vmem [#allocation10], 32
    %v261 = vld [vmem:[%s260] sm:$0xff]
    %v262 = vld [vmem:[%s260 + $0x8] sm:$0xff]
    %v263 = vld [vmem:[%s260 + $0x10] sm:$0xff]
    %v264 = vld [vmem:[%s260 + $0x18] sm:$0xff]
    %265 = vmatprep.subr.mxu0 0.0
    %266 = vmatpush1.msra.mxu0 %v261
    %267 = vmatprep.subr.mxu0 0.0
    %268 = vmatpush1.msra.mxu0 %v262
    %269 = vmatprep.subr.mxu0 0.0
    %270 = vmatpush1.msra.mxu0 %v263
    %271 = vmatprep.subr.mxu0 0.0
    %272 = vmatpush1.msra.mxu0 %v264
    %273 = vmatprep.subr.mxu0 0.0
    %274 = vmatpush1.msra.mxu0 0.0
    %275 = vmatprep.subr.mxu0 0.0
    %276 = vmatpush1.msra.mxu0 0.0
    %277 = vmatprep.subr.mxu0 0.0
    %278 = vmatpush1.msra.mxu0 0.0
    %279 = vmatprep.subr.mxu0 0.0
    %280 = vmatpush1.msra.mxu0 0.0
    %281 = vmatprep.subr.mxu0 0.0
    %282 = vmatpush1.msra.mxu0 0.0
    %283 = vmatprep.subr.mxu0 0.0
    %284 = vmatpush1.msra.mxu0 0.0
    %285 = vmatprep.subr.mxu0 0.0
    %286 = vmatpush1.msra.mxu0 0.0
    %287 = vmatprep.subr.mxu0 0.0
    %288 = vmatpush1.msra.mxu0 0.0
    %289 = vmatprep.subr.mxu0 0.0
    %290 = vmatpush1.msra.mxu0 0.0
    %291 = vmatprep.subr.mxu0 0.0
    %292 = vmatpush1.msra.mxu0 0.0
    %293 = vmatprep.subr.mxu0 0.0
    %294 = vmatpush1.msra.mxu0 0.0
    %295 = vmatprep.subr.mxu0 0.0
    %296 = vmatpush1.msra.mxu0 0.0
    %297 = vmatprep.subr.mxu0 0.0
    %298 = vmatpush1.msra.mxu0 0.0
    %299 = vmatprep.subr.mxu0 0.0
    %300 = vmatpush1.msra.mxu0 0.0
    %301 = vmatprep.subr.mxu0 0.0
    %302 = vmatpush1.msra.mxu0 0.0
    %303 = vmatprep.subr.mxu0 0.0
    %304 = vmatpush1.msra.mxu0 0.0
    %305 = vmatprep.subr.mxu0 0.0
    %306 = vmatpush1.msra.mxu0 0.0
    %307 = vmatprep.subr.mxu0 0.0
    %308 = vmatpush1.msra.mxu0 0.0
    %309 = vmatprep.subr.mxu0 0.0
    %310 = vmatpush1.msra.mxu0 0.0
    %311 = vmatprep.subr.mxu0 0.0
    %312 = vmatpush1.msra.mxu0 0.0
    %313 = vmatprep.subr.mxu0 0.0
    %314 = vmatpush1.msra.mxu0 0.0
    %315 = vmatprep.subr.mxu0 0.0
    %316 = vmatpush1.msra.mxu0 0.0
    %317 = vmatprep.subr.mxu0 0.0
    %318 = vmatpush1.msra.mxu0 0.0
    %319 = vmatprep.subr.mxu0 0.0
    %320 = vmatpush1.msra.mxu0 0.0
    %321 = vmatprep.subr.mxu0 0.0
    %322 = vmatpush1.msra.mxu0 0.0
    %323 = vmatprep.subr.mxu0 0.0
    %324 = vmatpush1.msra.mxu0 0.0
    %325 = vmatprep.subr.mxu0 0.0
    %326 = vmatpush1.msra.mxu0 0.0
    %327 = vmatprep.subr.mxu0 0.0
    %328 = vmatpush1.msra.mxu0 0.0
    %329 = vmatprep.mubr.f32.mxu0 0.0
    %330 = vmatmul.mubr.f32.gmra.mrb[0].mxu0 %v99
    %v331 = vpop.f32.mrb[0].mxu0
    %v332 = vadd.f32 0.0, %v331
    %v333 = vpop.f32.mrb[0].mxu0
    %334 = vdwg.mxu0
    %335 = vmatprep.subr.mxu0 0.0
    %336 = vmatpush1.msra.mxu0 %v258
    %337 = vmatprep.subr.mxu0 0.0
    %338 = vmatpush1.msra.mxu0 %v259
    %339 = vmatprep.subr.mxu0 0.0
    %340 = vmatpush1.msra.mxu0 0.0
    %341 = vmatprep.subr.mxu0 0.0
    %342 = vmatpush1.msra.mxu0 0.0
    %343 = vmatprep.subr.mxu0 0.0
    %344 = vmatpush1.msra.mxu0 0.0
    %345 = vmatprep.subr.mxu0 0.0
    %346 = vmatpush1.msra.mxu0 0.0
    %347 = vmatprep.subr.mxu0 0.0
    %348 = vmatpush1.msra.mxu0 0.0
    %349 = vmatprep.subr.mxu0 0.0
    %350 = vmatpush1.msra.mxu0 0.0
    %351 = vmatprep.subr.mxu0 0.0
    %352 = vmatpush1.msra.mxu0 0.0
    %353 = vmatprep.subr.mxu0 0.0
    %354 = vmatpush1.msra.mxu0 0.0
    %355 = vmatprep.subr.mxu0 0.0
    %356 = vmatpush1.msra.mxu0 0.0
    %357 = vmatprep.subr.mxu0 0.0
    %358 = vmatpush1.msra.mxu0 0.0
    %359 = vmatprep.subr.mxu0 0.0
    %360 = vmatpush1.msra.mxu0 0.0
    %361 = vmatprep.subr.mxu0 0.0
    %362 = vmatpush1.msra.mxu0 0.0
    %363 = vmatprep.subr.mxu0 0.0
    %364 = vmatpush1.msra.mxu0 0.0
    %365 = vmatprep.subr.mxu0 0.0
    %366 = vmatpush1.msra.mxu0 0.0
    %367 = vmatprep.subr.mxu0 0.0
    %368 = vmatpush1.msra.mxu0 0.0
    %369 = vmatprep.subr.mxu0 0.0
    %370 = vmatpush1.msra.mxu0 0.0
    %371 = vmatprep.subr.mxu0 0.0
    %372 = vmatpush1.msra.mxu0 0.0
    %373 = vmatprep.subr.mxu0 0.0
    %374 = vmatpush1.msra.mxu0 0.0
    %375 = vmatprep.subr.mxu0 0.0
    %376 = vmatpush1.msra.mxu0 0.0
    %377 = vmatprep.subr.mxu0 0.0
    %378 = vmatpush1.msra.mxu0 0.0
    %379 = vmatprep.subr.mxu0 0.0
    %380 = vmatpush1.msra.mxu0 0.0
    %381 = vmatprep.subr.mxu0 0.0
    %382 = vmatpush1.msra.mxu0 0.0
    %383 = vmatprep.subr.mxu0 0.0
    %384 = vmatpush1.msra.mxu0 0.0
    %385 = vmatprep.subr.mxu0 0.0
    %386 = vmatpush1.msra.mxu0 0.0
    %387 = vmatprep.subr.mxu0 0.0
    %388 = vmatpush1.msra.mxu0 0.0
    %389 = vmatprep.subr.mxu0 0.0
    %390 = vmatpush1.msra.mxu0 0.0
    %391 = vmatprep.subr.mxu0 0.0
    %392 = vmatpush1.msra.mxu0 0.0
    %393 = vmatprep.subr.mxu0 0.0
    %394 = vmatpush1.msra.mxu0 0.0
    %395 = vmatprep.subr.mxu0 0.0
    %396 = vmatpush1.msra.mxu0 0.0
    %397 = vmatprep.subr.mxu0 0.0
    %398 = vmatpush1.msra.mxu0 0.0
    %399 = vmatprep.mubr.f32.mxu0 0.0
    %400 = vmatmul.mubr.f32.gmra.mrb[0].mxu0 %v173
    %v401 = vpop.f32.mrb[0].mxu0
    %v402 = vadd.f32 %v332, %v401
    %v403 = vpop.f32.mrb[0].mxu0
    %404 = vdwg.mxu0
    %s405 = scalar_lea.vmem %s5, 1
    %v406 = vld [vmem:[%s405] sm:$0x1]
    %v408 = vlaneseq
    %v409 = vshrl.u32 %v408, 7
    %v410 = vsub.s32 0, %v409
    %v411 = vrot.slane %v406, %v410
    %v413 = vadd.f32 %v402, %v411
    %v414 = vmul.f32 %v413, 0.5
    %v415 = vtanh.pop %v414
    %v416 = vadd.f32 %v415, 1.0
    %v417 = vmul.f32 %v416, 0.5
    %s418 = scalar_lea.vmem [#allocation8], 32
    %v419 = vld [vmem:[%s418] sm:$0xff]
    %v420 = vld [vmem:[%s418 + $0x8] sm:$0xff]
    %s421 = scalar_lea.vmem [#allocation10], 64
    %v422 = vld [vmem:[%s421] sm:$0xff]
    %v423 = vld [vmem:[%s421 + $0x8] sm:$0xff]
    %v424 = vld [vmem:[%s421 + $0x10] sm:$0xff]
    %v425 = vld [vmem:[%s421 + $0x18] sm:$0xff]
    %426 = vmatprep.subr.mxu0 0.0
    %427 = vmatpush1.msra.mxu0 %v422
    %428 = vmatprep.subr.mxu0 0.0
    %429 = vmatpush1.msra.mxu0 %v423
    %430 = vmatprep.subr.mxu0 0.0
    %431 = vmatpush1.msra.mxu0 %v424
    %432 = vmatprep.subr.mxu0 0.0
    %433 = vmatpush1.msra.mxu0 %v425
    %434 = vmatprep.subr.mxu0 0.0
    %435 = vmatpush1.msra.mxu0 0.0
    %436 = vmatprep.subr.mxu0 0.0
    %437 = vmatpush1.msra.mxu0 0.0
    %438 = vmatprep.subr.mxu0 0.0
    %439 = vmatpush1.msra.mxu0 0.0
    %440 = vmatprep.subr.mxu0 0.0
    %441 = vmatpush1.msra.mxu0 0.0
    %442 = vmatprep.subr.mxu0 0.0
    %443 = vmatpush1.msra.mxu0 0.0
    %444 = vmatprep.subr.mxu0 0.0
    %445 = vmatpush1.msra.mxu0 0.0
    %446 = vmatprep.subr.mxu0 0.0
    %447 = vmatpush1.msra.mxu0 0.0
    %448 = vmatprep.subr.mxu0 0.0
    %449 = vmatpush1.msra.mxu0 0.0
    %450 = vmatprep.subr.mxu0 0.0
    %451 = vmatpush1.msra.mxu0 0.0
    %452 = vmatprep.subr.mxu0 0.0
    %453 = vmatpush1.msra.mxu0 0.0
    %454 = vmatprep.subr.mxu0 0.0
    %455 = vmatpush1.msra.mxu0 0.0
    %456 = vmatprep.subr.mxu0 0.0
    %457 = vmatpush1.msra.mxu0 0.0
    %458 = vmatprep.subr.mxu0 0.0
    %459 = vmatpush1.msra.mxu0 0.0
    %460 = vmatprep.subr.mxu0 0.0
    %461 = vmatpush1.msra.mxu0 0.0
    %462 = vmatprep.subr.mxu0 0.0
    %463 = vmatpush1.msra.mxu0 0.0
    %464 = vmatprep.subr.mxu0 0.0
    %465 = vmatpush1.msra.mxu0 0.0
    %466 = vmatprep.subr.mxu0 0.0
    %467 = vmatpush1.msra.mxu0 0.0
    %468 = vmatprep.subr.mxu0 0.0
    %469 = vmatpush1.msra.mxu0 0.0
    %470 = vmatprep.subr.mxu0 0.0
    %471 = vmatpush1.msra.mxu0 0.0
    %472 = vmatprep.subr.mxu0 0.0
    %473 = vmatpush1.msra.mxu0 0.0
    %474 = vmatprep.subr.mxu0 0.0
    %475 = vmatpush1.msra.mxu0 0.0
    %476 = vmatprep.subr.mxu0 0.0
    %477 = vmatpush1.msra.mxu0 0.0
    %478 = vmatprep.subr.mxu0 0.0
    %479 = vmatpush1.msra.mxu0 0.0
    %480 = vmatprep.subr.mxu0 0.0
    %481 = vmatpush1.msra.mxu0 0.0
    %482 = vmatprep.subr.mxu0 0.0
    %483 = vmatpush1.msra.mxu0 0.0
    %484 = vmatprep.subr.mxu0 0.0
    %485 = vmatpush1.msra.mxu0 0.0
    %486 = vmatprep.subr.mxu0 0.0
    %487 = vmatpush1.msra.mxu0 0.0
    %488 = vmatprep.subr.mxu0 0.0
    %489 = vmatpush1.msra.mxu0 0.0
    %490 = vmatprep.mubr.f32.mxu0 0.0
    %491 = vmatmul.mubr.f32.gmra.mrb[0].mxu0 %v99
    %v492 = vpop.f32.mrb[0].mxu0
    %v493 = vadd.f32 0.0, %v492
    %v494 = vpop.f32.mrb[0].mxu0
    %495 = vdwg.mxu0
    %496 = vmatprep.subr.mxu0 0.0
    %497 = vmatpush1.msra.mxu0 %v419
    %498 = vmatprep.subr.mxu0 0.0
    %499 = vmatpush1.msra.mxu0 %v420
    %500 = vmatprep.subr.mxu0 0.0
    %501 = vmatpush1.msra.mxu0 0.0
    %502 = vmatprep.subr.mxu0 0.0
    %503 = vmatpush1.msra.mxu0 0.0
    %504 = vmatprep.subr.mxu0 0.0
    %505 = vmatpush1.msra.mxu0 0.0
    %506 = vmatprep.subr.mxu0 0.0
    %507 = vmatpush1.msra.mxu0 0.0
    %508 = vmatprep.subr.mxu0 0.0
    %509 = vmatpush1.msra.mxu0 0.0
    %510 = vmatprep.subr.mxu0 0.0
    %511 = vmatpush1.msra.mxu0 0.0
    %512 = vmatprep.subr.mxu0 0.0
    %513 = vmatpush1.msra.mxu0 0.0
    %514 = vmatprep.subr.mxu0 0.0
    %515 = vmatpush1.msra.mxu0 0.0
    %516 = vmatprep.subr.mxu0 0.0
    %517 = vmatpush1.msra.mxu0 0.0
    %518 = vmatprep.subr.mxu0 0.0
    %519 = vmatpush1.msra.mxu0 0.0
    %520 = vmatprep.subr.mxu0 0.0
    %521 = vmatpush1.msra.mxu0 0.0
    %522 = vmatprep.subr.mxu0 0.0
    %523 = vmatpush1.msra.mxu0 0.0
    %524 = vmatprep.subr.mxu0 0.0
    %525 = vmatpush1.msra.mxu0 0.0
    %526 = vmatprep.subr.mxu0 0.0
    %527 = vmatpush1.msra.mxu0 0.0
    %528 = vmatprep.subr.mxu0 0.0
    %529 = vmatpush1.msra.mxu0 0.0
    %530 = vmatprep.subr.mxu0 0.0
    %531 = vmatpush1.msra.mxu0 0.0
    %532 = vmatprep.subr.mxu0 0.0
    %533 = vmatpush1.msra.mxu0 0.0
    %534 = vmatprep.subr.mxu0 0.0
    %535 = vmatpush1.msra.mxu0 0.0
    %536 = vmatprep.subr.mxu0 0.0
    %537 = vmatpush1.msra.mxu0 0.0
    %538 = vmatprep.subr.mxu0 0.0
    %539 = vmatpush1.msra.mxu0 0.0
    %540 = vmatprep.subr.mxu0 0.0
    %541 = vmatpush1.msra.mxu0 0.0
    %542 = vmatprep.subr.mxu0 0.0
    %543 = vmatpush1.msra.mxu0 0.0
    %544 = vmatprep.subr.mxu0 0.0
    %545 = vmatpush1.msra.mxu0 0.0
    %546 = vmatprep.subr.mxu0 0.0
    %547 = vmatpush1.msra.mxu0 0.0
    %548 = vmatprep.subr.mxu0 0.0
    %549 = vmatpush1.msra.mxu0 0.0
    %550 = vmatprep.subr.mxu0 0.0
    %551 = vmatpush1.msra.mxu0 0.0
    %552 = vmatprep.subr.mxu0 0.0
    %553 = vmatpush1.msra.mxu0 0.0
    %554 = vmatprep.subr.mxu0 0.0
    %555 = vmatpush1.msra.mxu0 0.0
    %556 = vmatprep.subr.mxu0 0.0
    %557 = vmatpush1.msra.mxu0 0.0
    %558 = vmatprep.subr.mxu0 0.0
    %559 = vmatpush1.msra.mxu0 0.0
    %560 = vmatprep.mubr.f32.mxu0 0.0
    %561 = vmatmul.mubr.f32.gmra.mrb[0].mxu0 %v173
    %v562 = vpop.f32.mrb[0].mxu0
    %v563 = vadd.f32 %v493, %v562
    %v564 = vpop.f32.mrb[0].mxu0
    %565 = vdwg.mxu0
    %s566 = scalar_lea.vmem %s5, 2
    %v567 = vld [vmem:[%s566] sm:$0x1]
    %v569 = vlaneseq
    %v570 = vshrl.u32 %v569, 7
    %v571 = vsub.s32 0, %v570
    %v572 = vrot.slane %v567, %v571
    %v574 = vadd.f32 %v563, %v572
    %v575 = vtanh.pop %v574
    %s576 = scalar_lea.vmem [#allocation8], 48
    %v577 = vld [vmem:[%s576] sm:$0xff]
    %v578 = vld [vmem:[%s576 + $0x8] sm:$0xff]
    %s579 = scalar_lea.vmem [#allocation10], 96
    %v580 = vld [vmem:[%s579] sm:$0xff]
    %v581 = vld [vmem:[%s579 + $0x8] sm:$0xff]
    %v582 = vld [vmem:[%s579 + $0x10] sm:$0xff]
    %v583 = vld [vmem:[%s579 + $0x18] sm:$0xff]
    %584 = vmatprep.subr.mxu0 0.0
    %585 = vmatpush1.msra.mxu0 %v580
    %586 = vmatprep.subr.mxu0 0.0
    %587 = vmatpush1.msra.mxu0 %v581
    %588 = vmatprep.subr.mxu0 0.0
    %589 = vmatpush1.msra.mxu0 %v582
    %590 = vmatprep.subr.mxu0 0.0
    %591 = vmatpush1.msra.mxu0 %v583
    %592 = vmatprep.subr.mxu0 0.0
    %593 = vmatpush1.msra.mxu0 0.0
    %594 = vmatprep.subr.mxu0 0.0
    %595 = vmatpush1.msra.mxu0 0.0
    %596 = vmatprep.subr.mxu0 0.0
    %597 = vmatpush1.msra.mxu0 0.0
    %598 = vmatprep.subr.mxu0 0.0
    %599 = vmatpush1.msra.mxu0 0.0
    %600 = vmatprep.subr.mxu0 0.0
    %601 = vmatpush1.msra.mxu0 0.0
    %602 = vmatprep.subr.mxu0 0.0
    %603 = vmatpush1.msra.mxu0 0.0
    %604 = vmatprep.subr.mxu0 0.0
    %605 = vmatpush1.msra.mxu0 0.0
    %606 = vmatprep.subr.mxu0 0.0
    %607 = vmatpush1.msra.mxu0 0.0
    %608 = vmatprep.subr.mxu0 0.0
    %609 = vmatpush1.msra.mxu0 0.0
    %610 = vmatprep.subr.mxu0 0.0
    %611 = vmatpush1.msra.mxu0 0.0
    %612 = vmatprep.subr.mxu0 0.0
    %613 = vmatpush1.msra.mxu0 0.0
    %614 = vmatprep.subr.mxu0 0.0
    %615 = vmatpush1.msra.mxu0 0.0
    %616 = vmatprep.subr.mxu0 0.0
    %617 = vmatpush1.msra.mxu0 0.0
    %618 = vmatprep.subr.mxu0 0.0
    %619 = vmatpush1.msra.mxu0 0.0
    %620 = vmatprep.subr.mxu0 0.0
    %621 = vmatpush1.msra.mxu0 0.0
    %622 = vmatprep.subr.mxu0 0.0
    %623 = vmatpush1.msra.mxu0 0.0
    %624 = vmatprep.subr.mxu0 0.0
    %625 = vmatpush1.msra.mxu0 0.0
    %626 = vmatprep.subr.mxu0 0.0
    %627 = vmatpush1.msra.mxu0 0.0
    %628 = vmatprep.subr.mxu0 0.0
    %629 = vmatpush1.msra.mxu0 0.0
    %630 = vmatprep.subr.mxu0 0.0
    %631 = vmatpush1.msra.mxu0 0.0
    %632 = vmatprep.subr.mxu0 0.0
    %633 = vmatpush1.msra.mxu0 0.0
    %634 = vmatprep.subr.mxu0 0.0
    %635 = vmatpush1.msra.mxu0 0.0
    %636 = vmatprep.subr.mxu0 0.0
    %637 = vmatpush1.msra.mxu0 0.0
    %638 = vmatprep.subr.mxu0 0.0
    %639 = vmatpush1.msra.mxu0 0.0
    %640 = vmatprep.subr.mxu0 0.0
    %641 = vmatpush1.msra.mxu0 0.0
    %642 = vmatprep.subr.mxu0 0.0
    %643 = vmatpush1.msra.mxu0 0.0
    %644 = vmatprep.subr.mxu0 0.0
    %645 = vmatpush1.msra.mxu0 0.0
    %646 = vmatprep.subr.mxu0 0.0
    %647 = vmatpush1.msra.mxu0 0.0
    %648 = vmatprep.mubr.f32.mxu0 0.0
    %649 = vmatmul.mubr.f32.gmra.mrb[0].mxu0 %v99
    %v650 = vpop.f32.mrb[0].mxu0
    %v651 = vadd.f32 0.0, %v650
    %v652 = vpop.f32.mrb[0].mxu0
    %653 = vdwg.mxu0
    %654 = vmatprep.subr.mxu0 0.0
    %655 = vmatpush1.msra.mxu0 %v577
    %656 = vmatprep.subr.mxu0 0.0
    %657 = vmatpush1.msra.mxu0 %v578
    %658 = vmatprep.subr.mxu0 0.0
    %659 = vmatpush1.msra.mxu0 0.0
    %660 = vmatprep.subr.mxu0 0.0
    %661 = vmatpush1.msra.mxu0 0.0
    %662 = vmatprep.subr.mxu0 0.0
    %663 = vmatpush1.msra.mxu0 0.0
    %664 = vmatprep.subr.mxu0 0.0
    %665 = vmatpush1.msra.mxu0 0.0
    %666 = vmatprep.subr.mxu0 0.0
    %667 = vmatpush1.msra.mxu0 0.0
    %668 = vmatprep.subr.mxu0 0.0
    %669 = vmatpush1.msra.mxu0 0.0
    %670 = vmatprep.subr.mxu0 0.0
    %671 = vmatpush1.msra.mxu0 0.0
    %672 = vmatprep.subr.mxu0 0.0
    %673 = vmatpush1.msra.mxu0 0.0
    %674 = vmatprep.subr.mxu0 0.0
    %675 = vmatpush1.msra.mxu0 0.0
    %676 = vmatprep.subr.mxu0 0.0
    %677 = vmatpush1.msra.mxu0 0.0
    %678 = vmatprep.subr.mxu0 0.0
    %679 = vmatpush1.msra.mxu0 0.0
    %680 = vmatprep.subr.mxu0 0.0
    %681 = vmatpush1.msra.mxu0 0.0
    %682 = vmatprep.subr.mxu0 0.0
    %683 = vmatpush1.msra.mxu0 0.0
    %684 = vmatprep.subr.mxu0 0.0
    %685 = vmatpush1.msra.mxu0 0.0
    %686 = vmatprep.subr.mxu0 0.0
    %687 = vmatpush1.msra.mxu0 0.0
    %688 = vmatprep.subr.mxu0 0.0
    %689 = vmatpush1.msra.mxu0 0.0
    %690 = vmatprep.subr.mxu0 0.0
    %691 = vmatpush1.msra.mxu0 0.0
    %692 = vmatprep.subr.mxu0 0.0
    %693 = vmatpush1.msra.mxu0 0.0
    %694 = vmatprep.subr.mxu0 0.0
    %695 = vmatpush1.msra.mxu0 0.0
    %696 = vmatprep.subr.mxu0 0.0
    %697 = vmatpush1.msra.mxu0 0.0
    %698 = vmatprep.subr.mxu0 0.0
    %699 = vmatpush1.msra.mxu0 0.0
    %700 = vmatprep.subr.mxu0 0.0
    %701 = vmatpush1.msra.mxu0 0.0
    %702 = vmatprep.subr.mxu0 0.0
    %703 = vmatpush1.msra.mxu0 0.0
    %704 = vmatprep.subr.mxu0 0.0
    %705 = vmatpush1.msra.mxu0 0.0
    %706 = vmatprep.subr.mxu0 0.0
    %707 = vmatpush1.msra.mxu0 0.0
    %708 = vmatprep.subr.mxu0 0.0
    %709 = vmatpush1.msra.mxu0 0.0
    %710 = vmatprep.subr.mxu0 0.0
    %711 = vmatpush1.msra.mxu0 0.0
    %712 = vmatprep.subr.mxu0 0.0
    %713 = vmatpush1.msra.mxu0 0.0
    %714 = vmatprep.subr.mxu0 0.0
    %715 = vmatpush1.msra.mxu0 0.0
    %716 = vmatprep.subr.mxu0 0.0
    %717 = vmatpush1.msra.mxu0 0.0
    %718 = vmatprep.mubr.f32.mxu0 0.0
    %719 = vmatmul.mubr.f32.gmra.mrb[0].mxu0 %v173
    %v720 = vpop.f32.mrb[0].mxu0
    %v721 = vadd.f32 %v651, %v720
    %v722 = vpop.f32.mrb[0].mxu0
    %723 = vdwg.mxu0
    %s724 = scalar_lea.vmem %s5, 3
    %v725 = vld [vmem:[%s724] sm:$0x1]
    %v727 = vlaneseq
    %v728 = vshrl.u32 %v727, 7
    %v729 = vsub.s32 0, %v728
    %v730 = vrot.slane %v725, %v729
    %v732 = vadd.f32 %v721, %v730
    %v733 = vmul.f32 %v732, 0.5
    %v734 = vtanh.pop %v733
    %v735 = vadd.f32 %v734, 1.0
    %v736 = vmul.f32 %v735, 0.5
    %v737 = vld [vmem:[#allocation7] sm:$0xff]
    %v738 = vmul.f32 %v737, %v417
    %v739 = vmul.f32 %v256, %v575
    %v740 = vadd.f32 %v738, %v739
    %v741 = vtanh.pop %v740
    %v742 = vmul.f32 %v736, %v741
    %743 = vst.msk [vmem:[#allocation11] sm:$0xff] %vm97, %v742
    %744 = vst.msk [vmem:[#allocation12] sm:$0xff] %vm97, %v740
    // Predicated region
    $region46: #{tpu_custom_call.1} parent=1 // pred_check
      _
    $region47: #{tpu_custom_call.1} parent=1 // pred_check_branch
      %746 = sbr.rel (0) target = $region49
    $region48: #{tpu_custom_call.1} parent=1 // pred_region
      %s748 = ssub.s32 128, 128
      %749 = vsyncadd [#allocation4], %s748
      %s751 = sshll.u32 [#allocation11], 4
      %s752 = int_to_ptr.vmem [resolvable:$true] %s751
      %754 = dma.vmem_to_hbm [thread:$0]  %s752, 128, %s6, [#allocation4]
    $region49: #{tpu_custom_call.1} parent=1 // pred_fallthru
      _
    // Predicated region
    $region50: #{tpu_custom_call.1} parent=1 // pred_check
      _
    $region51: #{tpu_custom_call.1} parent=1 // pred_check_branch
      %756 = sbr.rel (0) target = $region53
    $region52: #{tpu_custom_call.1} parent=1 // pred_region
      %s758 = ssub.s32 128, 128
      %759 = vsyncadd [#allocation13], %s758
      %s761 = sshll.u32 [#allocation12], 4
      %s762 = int_to_ptr.vmem [resolvable:$true] %s761
      %764 = dma.vmem_to_hbm [thread:$0]  %s762, 128, %s7, [#allocation13]
    $region53: #{tpu_custom_call.1} parent=1 // pred_fallthru
      _
    // Predicated region
    $region54: #{tpu_custom_call.1} parent=1 // pred_check
      _
    $region55: #{tpu_custom_call.1} parent=1 // pred_check_branch
      %766 = sbr.rel (0) target = $region57
    $region56: #{tpu_custom_call.1} parent=1 // pred_region
      %767 = dma.done [#allocation4], 128
    $region57: #{tpu_custom_call.1} parent=1 // pred_fallthru
      _
    // Predicated region
    $region58: #{tpu_custom_call.1} parent=1 // pred_check
      _
    $region59: #{tpu_custom_call.1} parent=1 // pred_check_branch
      %769 = sbr.rel (0) target = $region61
    $region60: #{tpu_custom_call.1} parent=1 // pred_region
      %770 = dma.done [#allocation13], 128
    $region61: #{tpu_custom_call.1} parent=1 // pred_fallthru
      _
    %771 = vsyncpa [#allocation3], 1
    %772 = vsyncpa [#allocation6], 1
    %773 = vsyncpa [#allocation9], 1
    %774 = vsyncpa [#allocation4], 1
    %775 = vsyncpa [#allocation13], 1

</llo_original>
